<compile_context>
chip_gen: v6e
topology: v6e:2x2x1
jax: 0.10.0
libtpu: 0.0.40
codegen_flags: <defaults>
</compile_context>

<pallas_src>
import functools

import jax
import jax.numpy as jnp
from jax import lax
from jax.experimental import pallas as pl
from jax.experimental.pallas import tpu as pltpu

_EPS = 1e-12  # matches F.normalize default eps


def _attractor_kernel(h_ref, cnt_ref, c_ref, attract_ref, assign_ref, *,
                      sub_rows: int, n_sub: int, k_valid: int, mxu_dtype):
    # h_ref:       (TILE_N, D)      streamed row tile (native input dtype)
    # cnt_ref:     (D, K_pad)       pre-normalized, pre-transposed centroids
    # c_ref:       (K_pad, D)       raw centroids (padded rows are zero)
    # attract_ref: (TILE_N, D)
    # assign_ref:  (TILE_N, K_pad)  lane-dense (K padded to a 128 multiple)
    c_norm_t = cnt_ref[...]          # resident, hoisted out of the sub-tile loop
    c_raw = c_ref[...]
    k_pad = c_norm_t.shape[-1]

    def body(i, carry):
        r = pl.multiple_of(i * sub_rows, sub_rows)
        h = h_ref[pl.ds(r, sub_rows), :]                       # (sub, D)

        # inverse row norm in f32; single EUP rsqrt (eps per F.normalize).
        hf = h.astype(jnp.float32)
        ss = jnp.sum(hf * hf, axis=-1, keepdims=True)          # (sub, 1)
        inv_norm = lax.rsqrt(jnp.maximum(ss, _EPS * _EPS))

        # cosine logits: (h @ c_norm^T) * (1/||h||).  bf16 MXU operands,
        # f32 accumulation; no in-kernel transpose.
        logits = jnp.dot(h.astype(mxu_dtype), c_norm_t,
                         preferred_element_type=jnp.float32)   # (sub, K_pad)
        logits = logits * inv_norm

        if k_valid < k_pad:
            # mask padded centroid columns so they get zero softmax weight
            lane = lax.broadcasted_iota(jnp.int32, logits.shape, 1)
            logits = jnp.where(lane < k_valid, logits, -jnp.inf)

        # softmax over the centroid axis (exact normalization)
        m = jnp.max(logits, axis=-1, keepdims=True)
        e = jnp.exp(logits - m)
        assign = e / jnp.sum(e, axis=-1, keepdims=True)        # (sub, K_pad)

        # project back through the (un-normalized) centroids
        attract = jnp.dot(assign.astype(mxu_dtype), c_raw,
                          preferred_element_type=jnp.float32)  # (sub, D)

        attract_ref[pl.ds(r, sub_rows), :] = attract.astype(attract_ref.dtype)
        assign_ref[pl.ds(r, sub_rows), :] = assign.astype(assign_ref.dtype)
        return carry

    lax.fori_loop(0, n_sub, body, 0, unroll=True)


def _round_up(x: int, m: int) -> int:
    return ((x + m - 1) // m) * m


def _vmem_limit_bytes() -> int:
    """~75% of physical VMEM, capped at 100 MiB.

    v5e/v6e (128 MiB physical) -> ~96 MiB; v7x (64 MiB) -> ~48 MiB.  Falls
    back to the v7x worst case if the hardware query is unavailable."""
    try:
        cap = int(pltpu.get_tpu_info().vmem_capacity_bytes)
    except Exception:
        cap = 64 << 20
    return min((cap * 3) // 4, 100 << 20)


def _pick_tile_n(bn: int, d: int, k_pad: int, in_itemsize: int,
                 out_itemsize: int, mxu_itemsize: int,
                 vmem_limit: int) -> int:
    """Pick the biggest row tile that fits the VMEM budget.

    Accounts for: double-buffered streamed h / attract / assign tiles, the two
    resident (double-buffered) centroid tables, and the f32 intermediates
    (logits, exp, assign, attract) materialized in the body."""
    resident = 2 * 2 * d * k_pad * mxu_itemsize              # both tables, x2 bufs
    stream_per_row = 2 * (d * in_itemsize                     # h tile
                          + d * out_itemsize                  # attract
                          + k_pad * out_itemsize)             # assign (padded)
    body_per_row = (2 * d + 3 * k_pad) * 4                    # f32 intermediates
    per_row = max(stream_per_row + body_per_row, 1)

    budget = max(vmem_limit - resident - (4 << 20), 1 << 20)  # headroom
    tile = budget // per_row
    tile = min(tile, 2048, bn)                                # 512-2048 target

    # keep >= 2 grid programs once the problem is big enough: lets v7x's two
    # TensorCores both work, and improves DMA/compute overlap everywhere.
    if bn >= 512:
        tile = min(tile, -(-bn // 2))

    if tile >= bn:
        return bn

    row_mult = 8 * max(1, 4 // in_itemsize)   # 8 rows for f32, 16 for bf16
    if tile >= 128:
        tile = (tile // 128) * 128            # MXU / lane friendly
    else:
        tile = (tile // row_mult) * row_mult
    return max(tile, row_mult)


def _pick_n_sub(tile_n: int) -> int:
    """Split the tile into sub-tiles to overlap MXU matmuls with softmax."""
    for n in (4, 2):
        sub = tile_n // n
        if tile_n % n == 0 and sub % 8 == 0 and sub >= 128:
            return n
    return 1


def attractor_symbol_forward(h: jax.Array, centroids: jax.Array,
                             tile_n: int | None = None):
    """h: (B, N, D), centroids: (K, D) -> (attract (B,N,D), assign (B,N,K))."""
    B, N, D = h.shape
    K, Dc = centroids.shape
    assert D == Dc
    bn = B * N
    h2 = h.reshape(bn, D)                                     # free (contiguous)

    # MXU is bf16-native on all generations; keep f32 accumulation in-kernel.
    mxu_dtype = jnp.bfloat16 if h.dtype == jnp.float32 else h.dtype

    # Pad K to a lane-dense multiple of 128 for the assign writeback.
    K_pad = _round_up(K, 128)

    # Hoist centroid normalization + transpose out of the kernel (done once).
    c32 = centroids.astype(jnp.float32)
    c_norm = c32 * lax.rsqrt(jnp.maximum(
        jnp.sum(c32 * c32, axis=-1, keepdims=True), _EPS * _EPS))
    c_norm_t = jnp.transpose(c_norm)                          # (D, K)
    if K_pad != K:
        c_norm_t = jnp.pad(c_norm_t, ((0, 0), (0, K_pad - K)))
        c_pad = jnp.pad(c32, ((0, K_pad - K), (0, 0)))        # zero rows
    else:
        c_pad = c32
    c_norm_t = c_norm_t.astype(mxu_dtype)                     # (D, K_pad)
    c_raw = c_pad.astype(mxu_dtype)                           # (K_pad, D)

    vmem_limit = _vmem_limit_bytes()
    if tile_n is None:
        tile_n = _pick_tile_n(bn, D, K_pad,
                              jnp.dtype(h.dtype).itemsize,
                              jnp.dtype(h.dtype).itemsize,
                              jnp.dtype(mxu_dtype).itemsize,
                              vmem_limit)
    tile_n = max(1, min(tile_n, bn))
    n_sub = _pick_n_sub(tile_n)

    kernel = functools.partial(_attractor_kernel,
                               sub_rows=tile_n // n_sub, n_sub=n_sub,
                               k_valid=K, mxu_dtype=mxu_dtype)

    grid = (pl.cdiv(bn, tile_n),)
    out_shapes = (
        jax.ShapeDtypeStruct((bn, D), h.dtype),
        jax.ShapeDtypeStruct((bn, K_pad), h.dtype),
    )
    attract2, assign2 = pl.pallas_call(
        kernel,
        out_shape=out_shapes,
        grid_spec=pltpu.PrefetchScalarGridSpec(
            num_scalar_prefetch=0,
            grid=grid,
            in_specs=[
                pl.BlockSpec((tile_n, D), lambda i: (i, 0)),     # h tile
                pl.BlockSpec((D, K_pad), lambda i: (0, 0)),      # c_norm^T (resident)
                pl.BlockSpec((K_pad, D), lambda i: (0, 0)),      # raw centroids
            ],
            out_specs=[
                pl.BlockSpec((tile_n, D), lambda i: (i, 0)),     # attract
                pl.BlockSpec((tile_n, K_pad), lambda i: (i, 0)), # assign (padded)
            ],
        ),
        compiler_params=pltpu.CompilerParams(
            dimension_semantics=("parallel",),
            vmem_limit_bytes=int(vmem_limit)),
    )(h2, c_norm_t, c_raw)

    attract = attract2.reshape(B, N, D)
    assign = assign2[:, :K].reshape(B, N, K)
    return attract, assign


def _reference_forward(h, centroids):
    h32 = h.astype(jnp.float32)
    c32 = centroids.astype(jnp.float32)
    h_norm = h32 / jnp.maximum(
        jnp.linalg.norm(h32, axis=-1, keepdims=True), _EPS)
    c_norm = c32 / jnp.maximum(
        jnp.linalg.norm(c32, axis=-1, keepdims=True), _EPS)
    logits = jnp.einsum("bnd,kd->bnk", h_norm, c_norm)
    assign = jax.nn.softmax(logits, axis=-1)
    attract = jnp.einsum("bnk,kd->bnd", assign, c32)
    return attract.astype(h.dtype), assign.astype(h.dtype)


if __name__ == "__main__":
    # Small shapes consistent with the module: batch=2, seq=8, dim=32, k=16.
    B, N, D, K = 2, 8, 32, 16

    key = jax.random.PRNGKey(0)
    k_h, k_c = jax.random.split(key)
    h = jax.random.normal(k_h, (B, N, D), dtype=jnp.float32)
    # deterministic stand-in for the torch.randn(k, dim) centroid buffer
    centroids = jax.random.normal(k_c, (K, D), dtype=jnp.float32)

    attract, assign = attractor_symbol_forward(h, centroids)
    jax.block_until_ready((attract, assign))

    attract_ref, assign_ref = _reference_forward(h, centroids)

    assert attract.shape == (B, N, D) and assign.shape == (B, N, K)
    # bf16 MXU operands (with f32 accumulation) add ~1e-3-level relative error
    # to the cosine logits and to the attract projection vs. the f32 reference.
    assert jnp.allclose(assign, assign_ref, atol=2e-2, rtol=2e-2)
    assert jnp.allclose(attract, attract_ref, atol=5e-2, rtol=5e-2)
    # softmax uses an exact denominator, so assignment rows sum to 1 tightly
    # (padded K columns are exactly zero and sliced off).
    assert jnp.allclose(jnp.sum(assign, axis=-1), 1.0, atol=1e-3)

    print("KERNEL_OK")
</pallas_src>

<mosaic_0001>
module attributes {stable_mosaic.version = 11 : i64} {
  func.func @_attractor_kernel(%arg0: i32, %arg1: memref<16x32xf32, #tpu.memory_space<vmem>>, %arg2: memref<32x128xbf16, #tpu.memory_space<vmem>>, %arg3: memref<128x32xbf16, #tpu.memory_space<vmem>>, %arg4: memref<16x32xf32, #tpu.memory_space<vmem>>, %arg5: memref<16x128xf32, #tpu.memory_space<vmem>>) attributes {dimension_semantics = [#tpu.dimension_semantics<parallel>], iteration_bounds = array<i64: 1>, scalar_prefetch = 0 : i64, scratch_operands = 0 : i64, tpu.core_type = #tpu.core_type<tc>, window_params = [{transform_indices = @transform_0, window_bounds = array<i64: 16, 32>}, {pipeline_mode = #tpu.pipeline_mode<synchronous>, transform_indices = @transform_1, window_bounds = array<i64: 32, 128>}, {pipeline_mode = #tpu.pipeline_mode<synchronous>, transform_indices = @transform_2, window_bounds = array<i64: 128, 32>}, {transform_indices = @transform_3, window_bounds = array<i64: 16, 32>}, {transform_indices = @transform_4, window_bounds = array<i64: 16, 128>}]} {
    %c0 = arith.constant 0 : index
    %c0_0 = arith.constant 0 : index
    %0 = vector.load %arg2[%c0, %c0_0] : memref<32x128xbf16, #tpu.memory_space<vmem>>, vector<32x128xbf16>
    %c0_1 = arith.constant 0 : index
    %c0_2 = arith.constant 0 : index
    %1 = vector.load %arg3[%c0_1, %c0_2] : memref<128x32xbf16, #tpu.memory_space<vmem>>, vector<128x32xbf16>
    %c0_i32 = arith.constant 0 : i32
    %c16_i32 = arith.constant 16 : i32
    %2 = arith.muli %c0_i32, %c16_i32 : i32
    %3 = tpu.assume_multiple %2, 16 : i32
    %4 = arith.index_cast %3 : i32 to index
    %c0_3 = arith.constant 0 : index
    %5 = vector.load %arg1[%4, %c0_3] : memref<16x32xf32, #tpu.memory_space<vmem>>, vector<16x32xf32>
    %6 = arith.mulf %5, %5 : vector<16x32xf32>
    %cst = arith.constant dense<0.000000e+00> : vector<16xf32>
    %7 = vector.multi_reduction <add>, %6, %cst [1] : vector<16x32xf32> to vector<16xf32>
    %8 = vector.shape_cast %7 : vector<16xf32> to vector<16x1xf32>
    %cst_4 = arith.constant 1.000000e-24 : f32
    %9 = vector.broadcast %cst_4 : f32 to vector<16x1xf32>
    %10 = arith.maximumf %8, %9 : vector<16x1xf32>
    %11 = math.rsqrt %10 : vector<16x1xf32>
    %12 = arith.truncf %5 : vector<16x32xf32> to vector<16x32xbf16>
    %cst_5 = arith.constant dense<0.000000e+00> : vector<16x128xf32>
    %13 = tpu.matmul %12, %0, %cst_5 {dimension_numbers = #tpu.dot_dimension_numbers<[1], [0], [0], [1], [0, 0, 1, 1], [], []>} : vector<16x32xbf16>, vector<32x128xbf16>, vector<16x128xf32> -> vector<16x128xf32>
    %14 = vector.broadcast %11 : vector<16x1xf32> to vector<16x128xf32>
    %15 = arith.mulf %13, %14 : vector<16x128xf32>
    %16 = tpu.iota {dimensions = array<i32: 1>} : vector<16x128xi32>
    %c16_i32_6 = arith.constant 16 : i32
    %17 = vector.broadcast %c16_i32_6 : i32 to vector<16x128xi32>
    %18 = arith.cmpi slt, %16, %17 : vector<16x128xi32>
    %cst_7 = arith.constant 0xFF800000 : f32
    %19 = vector.broadcast %cst_7 : f32 to vector<16x128xf32>
    %20 = arith.select %18, %15, %19 : vector<16x128xi1>, vector<16x128xf32>
    %cst_8 = arith.constant dense<0xFF800000> : vector<16xf32>
    %21 = vector.multi_reduction <maximumf>, %20, %cst_8 [1] : vector<16x128xf32> to vector<16xf32>
    %22 = vector.shape_cast %21 : vector<16xf32> to vector<16x1xf32>
    %23 = vector.broadcast %22 : vector<16x1xf32> to vector<16x128xf32>
    %24 = arith.subf %20, %23 : vector<16x128xf32>
    %25 = math.exp %24 : vector<16x128xf32>
    %cst_9 = arith.constant dense<0.000000e+00> : vector<16xf32>
    %26 = vector.multi_reduction <add>, %25, %cst_9 [1] : vector<16x128xf32> to vector<16xf32>
    %27 = vector.shape_cast %26 : vector<16xf32> to vector<16x1xf32>
    %28 = vector.broadcast %27 : vector<16x1xf32> to vector<16x128xf32>
    %29 = arith.divf %25, %28 : vector<16x128xf32>
    %30 = arith.truncf %29 : vector<16x128xf32> to vector<16x128xbf16>
    %cst_10 = arith.constant dense<0.000000e+00> : vector<16x32xf32>
    %31 = tpu.matmul %30, %1, %cst_10 {dimension_numbers = #tpu.dot_dimension_numbers<[1], [0], [0], [1], [0, 0, 1, 1], [], []>} : vector<16x128xbf16>, vector<128x32xbf16>, vector<16x32xf32> -> vector<16x32xf32>
    %32 = arith.index_cast %3 : i32 to index
    %c0_11 = arith.constant 0 : index
    %33 = vector.load %arg4[%32, %c0_11] : memref<16x32xf32, #tpu.memory_space<vmem>>, vector<16x32xf32>
    tpu.vector_store %arg4[%32, %c0_11], %31 {strides = array<i32>} : memref<16x32xf32, #tpu.memory_space<vmem>>, vector<16x32xf32>,
    %34 = arith.index_cast %3 : i32 to index
    %c0_12 = arith.constant 0 : index
    %35 = vector.load %arg5[%34, %c0_12] : memref<16x128xf32, #tpu.memory_space<vmem>>, vector<16x128xf32>
    tpu.vector_store %arg5[%34, %c0_12], %29 {strides = array<i32>} : memref<16x128xf32, #tpu.memory_space<vmem>>, vector<16x128xf32>,
    %c1_i32 = arith.constant 1 : i32
    return
  }
  func.func @transform_0(%arg0: i32) -> (i32, i32) {
    %c0_i32 = arith.constant 0 : i32
    %c0_i32_0 = arith.constant 0 : i32
    return %arg0, %c0_i32 : i32, i32
  }
  func.func @transform_1(%arg0: i32) -> (i32, i32) {
    %c0_i32 = arith.constant 0 : i32
    %c0_i32_0 = arith.constant 0 : i32
    %c0_i32_1 = arith.constant 0 : i32
    return %c0_i32, %c0_i32_0 : i32, i32
  }
  func.func @transform_2(%arg0: i32) -> (i32, i32) {
    %c0_i32 = arith.constant 0 : i32
    %c0_i32_0 = arith.constant 0 : i32
    %c0_i32_1 = arith.constant 0 : i32
    return %c0_i32, %c0_i32_0 : i32, i32
  }
  func.func @transform_3(%arg0: i32) -> (i32, i32) {
    %c0_i32 = arith.constant 0 : i32
    %c0_i32_0 = arith.constant 0 : i32
    return %arg0, %c0_i32 : i32, i32
  }
  func.func @transform_4(%arg0: i32) -> (i32, i32) {
    %c0_i32 = arith.constant 0 : i32
    %c0_i32_0 = arith.constant 0 : i32
    return %arg0, %c0_i32 : i32, i32
  }
}

</mosaic_0001>

<llo_original>
// kernel: tpu_custom_call.1
$region0: #{tpu_custom_call.1}
  #allocation0 [shape = 'u32[]', space=smem, size = 0x4, offset = 0x4, fixed_abs, tag = 'smem constant byte address 0x4 - core index']
  #allocation1 [shape = 'u32[144,128]{1,0:T(1,128)}', space=vmem, size = 0x12000, scoped, tag = 'internal scratch']
  %s0 = inlined_call_operand.vmem [shape: f32[16,32], index: 0, kind: input, shape index: {}]
  %s1 = inlined_call_operand.vmem [shape: bf16[32,128], index: 1, kind: input, shape index: {}]
  %s2 = inlined_call_operand.vmem [shape: bf16[128,32], index: 2, kind: input, shape index: {}]
  %s3 = inlined_call_operand.hbm [shape: f32[16,32], index: 3, kind: output, shape index: {0}]
  %s4 = inlined_call_operand.hbm [shape: f32[16,128], index: 4, kind: output, shape index: {1}]
  %5 = xla_tuple %s3, %s4
  %s6 = sld [smem:[#allocation0]]
  $region30: #{tpu_custom_call.1} parent=0
    _
  %s8 = ssub.s32 1, %s6
  %s9 = scalar_select 0, %s8, %s6
  $region1: #{tpu_custom_call.1} parent=0
    #allocation2 [shape = 'u8[8192]{0}', space=vmem, size = 0x2000, scoped, tag = 'output window, operand 0, single buffered']
    #allocation3 [shape = 's32[1]{0}', space=sflag, size = 0x4, scoped, tag = 'scoped memory for tpu_custom_call.1']
    #allocation4 [shape = 'u8[8192]{0}', space=vmem, size = 0x2000, scoped, tag = 'output window, operand 1, single buffered']
    #allocation5 [shape = 's32[1]{0}', space=sflag, size = 0x4, scoped, tag = 'scoped memory for tpu_custom_call.1']
    %10 = vsyncpa [#allocation3], 0
    %11 = vsyncpa [#allocation5], 0
    // Predicated region
    $region2: #{tpu_custom_call.1} parent=1 // pred_check
      _
    $region3: #{tpu_custom_call.1} parent=1 // pred_check_branch
      %13 = sbr.rel (0) target = $region5
    $region4: #{tpu_custom_call.1} parent=1 // pred_region
      _
    $region5: #{tpu_custom_call.1} parent=1 // pred_fallthru
      _
    // Predicated region
    $region6: #{tpu_custom_call.1} parent=1 // pred_check
      _
    $region7: #{tpu_custom_call.1} parent=1 // pred_check_branch
      %15 = sbr.rel (0) target = $region9
    $region8: #{tpu_custom_call.1} parent=1 // pred_region
      _
    $region9: #{tpu_custom_call.1} parent=1 // pred_fallthru
      _
    // Predicated region
    $region10: #{tpu_custom_call.1} parent=1 // pred_check
      _
    $region11: #{tpu_custom_call.1} parent=1 // pred_check_branch
      %17 = sbr.rel (0) target = $region13
    $region12: #{tpu_custom_call.1} parent=1 // pred_region
      _
    $region13: #{tpu_custom_call.1} parent=1 // pred_fallthru
      _
    %v19 = vld [vmem:[%s1] sm:$0xf]
    %v20 = vld [vmem:[%s1 + $0x4] sm:$0xf]
    %v21 = vld [vmem:[%s1 + $0x8] sm:$0xf]
    %v22 = vld [vmem:[%s1 + $0xc] sm:$0xf]
    %v23 = vld [vmem:[%s2] sm:$0xf]
    %v24 = vld [vmem:[%s2 + $0x4] sm:$0xf]
    %v25 = vld [vmem:[%s2 + $0x8] sm:$0xf]
    %v26 = vld [vmem:[%s2 + $0xc] sm:$0xf]
    %v27 = vld [vmem:[%s2 + $0x10] sm:$0xf]
    %v28 = vld [vmem:[%s2 + $0x14] sm:$0xf]
    %v29 = vld [vmem:[%s2 + $0x18] sm:$0xf]
    %v30 = vld [vmem:[%s2 + $0x1c] sm:$0xf]
    %v31 = vld [vmem:[%s2 + $0x20] sm:$0xf]
    %v32 = vld [vmem:[%s2 + $0x24] sm:$0xf]
    %v33 = vld [vmem:[%s2 + $0x28] sm:$0xf]
    %v34 = vld [vmem:[%s2 + $0x2c] sm:$0xf]
    %v35 = vld [vmem:[%s2 + $0x30] sm:$0xf]
    %v36 = vld [vmem:[%s2 + $0x34] sm:$0xf]
    %v37 = vld [vmem:[%s2 + $0x38] sm:$0xf]
    %v38 = vld [vmem:[%s2 + $0x3c] sm:$0xf]
    %v39 = vld [vmem:[%s0] sm:$0xff]
    %v40 = vld [vmem:[%s0 + $0x8] sm:$0xff]
    %v41 = vmul.f32 %v39, %v39
    %v42 = vmul.f32 %v40, %v40
    %vm43 = vcmask 261120
    %v44 = vsel %vm43, %v41, 0.0
    %45 = vadd.xlane.f32.xlu0 %v44
    %v46 = vpop.xlane.xlu0 %45
    %v47 = vsel %vm43, %v42, 0.0
    %48 = vadd.xlane.f32.xlu0 %v47
    %v49 = vpop.xlane.xlu0 %48
    %v50 = vmax.f32 %v46, 1e-24
    %v51 = vmax.f32 %v49, 1e-24
    %v52 = vrsqrt.pop %v50
    %v53 = vrsqrt.pop %v51
    %v54 = vpack.c.bf16 %v40, %v39
    %v59 = vunpack.c.l.b16 %v19
    %v60 = vunpack.c.l.b16 %v20
    %v61 = vunpack.c.l.b16 %v21
    %v62 = vunpack.c.l.b16 %v22
    %v63 = vpack.c.b16 %v60, %v59
    %v64 = vpack.c.b16 %v62, %v61
    %v68 = vsel %vm43, %v54, 0
    %70 = vmatprep.subr.bf16.mxu0 0
    %71 = vmatpush1.bf16.msra.mxu0 0
    %72 = vmatprep.subr.bf16.mxu0 0
    %73 = vmatpush1.bf16.msra.mxu0 0
    %74 = vmatprep.subr.bf16.mxu0 0
    %75 = vmatpush1.bf16.msra.mxu0 0
    %76 = vmatprep.subr.bf16.mxu0 0
    %77 = vmatpush1.bf16.msra.mxu0 0
    %78 = vmatprep.subr.bf16.mxu0 0
    %79 = vmatpush1.bf16.msra.mxu0 0
    %80 = vmatprep.subr.bf16.mxu0 0
    %81 = vmatpush1.bf16.msra.mxu0 0
    %82 = vmatprep.subr.bf16.mxu0 0
    %83 = vmatpush1.bf16.msra.mxu0 %v64
    %84 = vmatprep.subr.bf16.mxu0 0
    %85 = vmatpush1.bf16.msra.mxu0 %v63
    %86 = vmatprep.subr.bf16.mxu0 0
    %87 = vmatpush2.bf16.msra.mxu0 0
    %88 = vmatprep.subr.bf16.mxu0 0
    %89 = vmatpush2.bf16.msra.mxu0 0
    %90 = vmatprep.subr.bf16.mxu0 0
    %91 = vmatpush2.bf16.msra.mxu0 0
    %92 = vmatprep.subr.bf16.mxu0 0
    %93 = vmatpush2.bf16.msra.mxu0 0
    %94 = vmatprep.subr.bf16.mxu0 0
    %95 = vmatpush2.bf16.msra.mxu0 0
    %96 = vmatprep.subr.bf16.mxu0 0
    %97 = vmatpush2.bf16.msra.mxu0 0
    %98 = vmatprep.subr.bf16.mxu0 0
    %99 = vmatpush2.bf16.msra.mxu0 0
    %100 = vmatprep.subr.bf16.mxu0 0
    %101 = vmatpush2.bf16.msra.mxu0 0
    %102 = vmatprep.mubr.bf16.mxu0 0
    %103 = vmatmul.mubr.bf16.gmra.mxu0 %v68
    %v104 = vpop.f32.mrf.mxu0
    %v105 = vadd.f32 0.0, %v104
    %v106 = vpop.f32.mrf.mxu0
    %v107 = vpop.f32.mrf.mxu0
    %v108 = vadd.f32 0.0, %v107
    %v109 = vpop.f32.mrf.mxu0
    %110 = vdwg.mxu0
    %v111 = vmul.f32 %v105, %v52
    %v112 = vmul.f32 %v108, %v53
    %v113 = vlaneseq
    %v114 = vand.u32 %v113, 127
    %vm115 = vcmp.lt.s32.totalorder %v114, 16
    %v116 = vsel %vm115, %v111, -inf
    %v117 = vsel %vm115, %v112, -inf
    %118 = vmax.xlane.f32.xlu0 %v116
    %v119 = vpop.xlane.xlu0 %118
    %120 = vmax.xlane.f32.xlu0 %v117
    %v121 = vpop.xlane.xlu0 %120
    %v122 = vsub.f32 %v116, %v119
    %v123 = vsub.f32 %v117, %v121
    %v124 = vmul.f32 %v122, 1.442695
    %v125 = vpow.pop %v124
    %v126 = vmul.f32 %v123, 1.442695
    %v127 = vpow.pop %v126
    %128 = vadd.xlane.f32.xlu0 %v125
    %v129 = vpop.xlane.xlu0 %128
    %130 = vadd.xlane.f32.xlu0 %v127
    %v131 = vpop.xlane.xlu0 %130
    %v132 = vrcp.pop %v129
    %v133 = vmul.f32 %v125, %v132
    %v134 = vrcp.pop %v131
    %v135 = vmul.f32 %v127, %v134
    %v136 = vpack.c.bf16 %v135, %v133
    %v153 = vunpack.c.l.b16 %v23
    %v154 = vunpack.c.l.b16 %v24
    %v155 = vunpack.c.l.b16 %v25
    %v156 = vunpack.c.l.b16 %v26
    %v157 = vunpack.c.l.b16 %v27
    %v158 = vunpack.c.l.b16 %v28
    %v159 = vunpack.c.l.b16 %v29
    %v160 = vunpack.c.l.b16 %v30
    %v161 = vunpack.c.l.b16 %v31
    %v162 = vunpack.c.l.b16 %v32
    %v163 = vunpack.c.l.b16 %v33
    %v164 = vunpack.c.l.b16 %v34
    %v165 = vunpack.c.l.b16 %v35
    %v166 = vunpack.c.l.b16 %v36
    %v167 = vunpack.c.l.b16 %v37
    %v168 = vunpack.c.l.b16 %v38
    %v169 = vpack.c.b16 %v154, %v153
    %v170 = vpack.c.b16 %v156, %v155
    %v171 = vpack.c.b16 %v158, %v157
    %v172 = vpack.c.b16 %v160, %v159
    %v173 = vpack.c.b16 %v162, %v161
    %v174 = vpack.c.b16 %v164, %v163
    %v175 = vpack.c.b16 %v166, %v165
    %v176 = vpack.c.b16 %v168, %v167
    %185 = vmatprep.subr.bf16.mxu0 0
    %186 = vmatpush1.bf16.msra.mxu0 %v176
    %187 = vmatprep.subr.bf16.mxu0 0
    %188 = vmatpush1.bf16.msra.mxu0 %v175
    %189 = vmatprep.subr.bf16.mxu0 0
    %190 = vmatpush1.bf16.msra.mxu0 %v174
    %191 = vmatprep.subr.bf16.mxu0 0
    %192 = vmatpush1.bf16.msra.mxu0 %v173
    %193 = vmatprep.subr.bf16.mxu0 0
    %194 = vmatpush1.bf16.msra.mxu0 %v172
    %195 = vmatprep.subr.bf16.mxu0 0
    %196 = vmatpush1.bf16.msra.mxu0 %v171
    %197 = vmatprep.subr.bf16.mxu0 0
    %198 = vmatpush1.bf16.msra.mxu0 %v170
    %199 = vmatprep.subr.bf16.mxu0 0
    %200 = vmatpush1.bf16.msra.mxu0 %v169
    %201 = vmatprep.subr.bf16.mxu0 0
    %202 = vmatpush2.bf16.msra.mxu0 0
    %203 = vmatprep.subr.bf16.mxu0 0
    %204 = vmatpush2.bf16.msra.mxu0 0
    %205 = vmatprep.subr.bf16.mxu0 0
    %206 = vmatpush2.bf16.msra.mxu0 0
    %207 = vmatprep.subr.bf16.mxu0 0
    %208 = vmatpush2.bf16.msra.mxu0 0
    %209 = vmatprep.subr.bf16.mxu0 0
    %210 = vmatpush2.bf16.msra.mxu0 0
    %211 = vmatprep.subr.bf16.mxu0 0
    %212 = vmatpush2.bf16.msra.mxu0 0
    %213 = vmatprep.subr.bf16.mxu0 0
    %214 = vmatpush2.bf16.msra.mxu0 0
    %215 = vmatprep.subr.bf16.mxu0 0
    %216 = vmatpush2.bf16.msra.mxu0 0
    %217 = vmatprep.mubr.bf16.mxu0 0
    %218 = vmatmul.mubr.bf16.gmra.mxu0 %v136
    %v219 = vpop.f32.mrf.mxu0
    %v220 = vadd.f32 0.0, %v219
    %v221 = vpop.f32.mrf.mxu0
    %v222 = vpop.f32.mrf.mxu0
    %v223 = vadd.f32 0.0, %v222
    %v224 = vpop.f32.mrf.mxu0
    %225 = vdwg.mxu0
    %226 = vst.msk [vmem:[#allocation2] sm:$0xff] %vm43, %v220
    %227 = vst.msk [vmem:[#allocation2 + $0x8] sm:$0xff] %vm43, %v223
    %228 = vst [vmem:[#allocation4] sm:$0xff] %v133
    %229 = vst [vmem:[#allocation4 + $0x8] sm:$0xff] %v135
    // Predicated region
    $region14: #{tpu_custom_call.1} parent=1 // pred_check
      _
    $region15: #{tpu_custom_call.1} parent=1 // pred_check_branch
      %231 = sbr.rel (0) target = $region17
    $region16: #{tpu_custom_call.1} parent=1 // pred_region
      %s233 = ssub.s32 256, 256
      %234 = vsyncadd [#allocation3], %s233
      %s235 = sshll.u32 [#allocation2], 4
      %s236 = int_to_ptr.vmem [resolvable:$true] %s235
      %241 = dma.vmem_to_hbm [thread:$0]  %s236, 256, %s3, [#allocation3], 128, 128, 8
    $region17: #{tpu_custom_call.1} parent=1 // pred_fallthru
      _
    // Predicated region
    $region18: #{tpu_custom_call.1} parent=1 // pred_check
      _
    $region19: #{tpu_custom_call.1} parent=1 // pred_check_branch
      %243 = sbr.rel (0) target = $region21
    $region20: #{tpu_custom_call.1} parent=1 // pred_region
      %s245 = ssub.s32 256, 256
      %246 = vsyncadd [#allocation5], %s245
      %s247 = sshll.u32 [#allocation4], 4
      %s248 = int_to_ptr.vmem [resolvable:$true] %s247
      %253 = dma.vmem_to_hbm [thread:$0]  %s248, 256, %s4, [#allocation5], 128, 128, 8
    $region21: #{tpu_custom_call.1} parent=1 // pred_fallthru
      _
    // Predicated region
    $region22: #{tpu_custom_call.1} parent=1 // pred_check
      _
    $region23: #{tpu_custom_call.1} parent=1 // pred_check_branch
      %255 = sbr.rel (0) target = $region25
    $region24: #{tpu_custom_call.1} parent=1 // pred_region
      %256 = dma.done [#allocation3], 256
    $region25: #{tpu_custom_call.1} parent=1 // pred_fallthru
      _
    // Predicated region
    $region26: #{tpu_custom_call.1} parent=1 // pred_check
      _
    $region27: #{tpu_custom_call.1} parent=1 // pred_check_branch
      %258 = sbr.rel (0) target = $region29
    $region28: #{tpu_custom_call.1} parent=1 // pred_region
      %259 = dma.done [#allocation5], 256
    $region29: #{tpu_custom_call.1} parent=1 // pred_fallthru
      _
    %260 = vsyncpa [#allocation3], 1
    %261 = vsyncpa [#allocation5], 1

</llo_original>
